<compile_context>
chip_gen: v7x
topology: tpu7x:2x2x1
jax: 0.10.0
libtpu: 0.0.40
codegen_flags: <defaults>
</compile_context>

<pallas_src>
import functools

import jax
import jax.numpy as jnp
from jax.experimental import pallas as pl
from jax.experimental.pallas import tpu as pltpu


def _vmem_capacity_bytes():
    try:
        return int(pltpu.get_tpu_info().vmem_capacity_bytes)
    except Exception:
        return 64 * 1024 * 1024  # conservative (v7x-sized) fallback


def _cdiv(a, b):
    return -(-a // b)


def _pick_bn(n, bytes_per_sample, budget):
    """Largest samples-per-block under the budget, preferring an EVEN number of
    grid steps so the 'parallel' axis splits evenly across v7x's two
    TensorCores (harmless on single-TC v5e/v6e)."""
    bn_max = max(1, min(n, budget // max(1, bytes_per_sample)))
    for bn in range(bn_max, 0, -1):
        if _cdiv(n, bn) % 2 == 0:
            return bn
    return bn_max  # e.g. N == 1: no even option exists


# ----------------------------- fused single-pass path ------------------------

def _se_fused_kernel(x_ref, w1t_ref, w2t_ref, w3t_ref, o_ref, *, inv_hw):
    # Squeeze: pool directly from the (bn, C, HW) block with an f32 accumulator
    # -- no full-block f32 copy is materialized / kept live.
    pooled = jnp.sum(x_ref[...], axis=-1, dtype=jnp.float32) * inv_hw   # (bn, C)

    # Excitation: tiny bottleneck MLP, weights already transposed + f32.
    h = jnp.maximum(
        jnp.dot(pooled, w1t_ref[...], preferred_element_type=jnp.float32), 0.0)
    h = jnp.maximum(
        jnp.dot(h, w2t_ref[...], preferred_element_type=jnp.float32), 0.0)
    z = jnp.dot(h, w3t_ref[...], preferred_element_type=jnp.float32)
    # exp goes to the EUP; exact reciprocal keeps full f32 sigmoid accuracy
    # (the (bn, C) tensor is tiny, so the divide cost is negligible).
    scale = pl.reciprocal(1.0 + jnp.exp(-z), approx=False)              # (bn, C)

    # Scale in the ref's native dtype (second cheap VMEM read of the block).
    o_ref[...] = x_ref[...] * scale[:, :, None].astype(o_ref.dtype)


def _se_fused(x2, w1t, w2t, w3t, *, bn, vmem_limit):
    N, C, HW = x2.shape
    Cr = w1t.shape[1]
    itemsize = x2.dtype.itemsize
    cost = pl.CostEstimate(
        flops=2 * N * C * HW + 2 * N * (2 * C * Cr + Cr * Cr),
        transcendentals=N * C,
        bytes_accessed=2 * N * C * HW * itemsize + 4 * (2 * C * Cr + Cr * Cr),
    )
    return pl.pallas_call(
        functools.partial(_se_fused_kernel, inv_hw=1.0 / HW),
        out_shape=jax.ShapeDtypeStruct((N, C, HW), x2.dtype),
        grid_spec=pltpu.PrefetchScalarGridSpec(
            num_scalar_prefetch=0,
            grid=(_cdiv(N, bn),),
            in_specs=[
                pl.BlockSpec((bn, C, HW), lambda i: (i, 0, 0)),
                pl.BlockSpec((C, Cr), lambda i: (0, 0)),
                pl.BlockSpec((Cr, Cr), lambda i: (0, 0)),
                pl.BlockSpec((Cr, C), lambda i: (0, 0)),
            ],
            out_specs=pl.BlockSpec((bn, C, HW), lambda i: (i, 0, 0)),
        ),
        input_output_aliases={0: 0},
        cost_estimate=cost,
        compiler_params=pltpu.CompilerParams(
            dimension_semantics=("parallel",),
            vmem_limit_bytes=vmem_limit,
        ),
    )(x2, w1t, w2t, w3t)


# ------------------- HW-tiled two-pass path (huge samples) -------------------

def _pool_kernel(x_ref, pooled_ref, *, hw, inv_hw):
    j = pl.program_id(1)

    @pl.when(j == 0)
    def _():
        pooled_ref[...] = jnp.zeros_like(pooled_ref)

    thw = x_ref.shape[-1]
    # Mask lanes past HW (partial trailing spatial tile reads padded garbage).
    lane = jax.lax.broadcasted_iota(jnp.int32, x_ref.shape, 2) + j * thw
    vals = jnp.where(lane < hw, x_ref[...].astype(jnp.float32), 0.0)
    pooled_ref[...] += jnp.sum(vals, axis=-1, keepdims=True)

    @pl.when(j == pl.num_programs(1) - 1)
    def _():
        pooled_ref[...] = pooled_ref[...] * inv_hw


def _scale_kernel(x_ref, s_ref, o_ref):
    o_ref[...] = x_ref[...] * s_ref[...]


def _se_two_pass(x2, w1t, w2t, w3t, *, budget, vmem_limit):
    # TODO(synk): a channels-last (N, HW, C) layout with C % 128 == 0 would give
    # lane-dense stores for non-128-multiple HW, but transposing here would cost
    # an extra full HBM pass over x, so the native (N, C, HW) layout is kept.
    N, C, HW = x2.shape
    itemsize = x2.dtype.itemsize
    thw = (budget // max(1, C * itemsize)) // 128 * 128
    thw = max(thw, 128)
    if thw >= HW:
        thw = HW
    nhw = _cdiv(HW, thw)

    # Pass 1: accumulate the average pool over spatial tiles.
    pooled = pl.pallas_call(
        functools.partial(_pool_kernel, hw=HW, inv_hw=1.0 / HW),
        out_shape=jax.ShapeDtypeStruct((N, C, 1), jnp.float32),
        grid_spec=pltpu.PrefetchScalarGridSpec(
            num_scalar_prefetch=0,
            grid=(N, nhw),
            in_specs=[pl.BlockSpec((1, C, thw), lambda i, j: (i, 0, j))],
            out_specs=pl.BlockSpec((1, C, 1), lambda i, j: (i, 0, 0)),
        ),
        compiler_params=pltpu.CompilerParams(
            dimension_semantics=("parallel", "arbitrary"),
            vmem_limit_bytes=vmem_limit,
        ),
    )(x2)

    # Excitation MLP on the tiny (N, C) pooled tensor in plain JAX (f32).
    y = pooled[:, :, 0]
    y = jax.nn.relu(y @ w1t)
    y = jax.nn.relu(y @ w2t)
    s = jax.nn.sigmoid(y @ w3t).astype(x2.dtype)[:, :, None]   # (N, C, 1)

    # Pass 2: tiled scale of x by the per-(sample, channel) gate.
    return pl.pallas_call(
        _scale_kernel,
        out_shape=jax.ShapeDtypeStruct((N, C, HW), x2.dtype),
        grid_spec=pltpu.PrefetchScalarGridSpec(
            num_scalar_prefetch=0,
            grid=(N, nhw),
            in_specs=[
                pl.BlockSpec((1, C, thw), lambda i, j: (i, 0, j)),
                pl.BlockSpec((1, C, 1), lambda i, j: (i, 0, 0)),
            ],
            out_specs=pl.BlockSpec((1, C, thw), lambda i, j: (i, 0, j)),
        ),
        input_output_aliases={0: 0},
        compiler_params=pltpu.CompilerParams(
            dimension_semantics=("parallel", "parallel"),
            vmem_limit_bytes=vmem_limit,
        ),
    )(x2, s)


# ----------------------------------- wrapper ---------------------------------

def se_layer(x, w1, w2, w3, *, block_budget_bytes=None):
    """SELayer forward.

    x:  (N, C, H, W)
    w1: (Cr, C)   -- fc[0].weight (Linear, bias=False)
    w2: (Cr, Cr)  -- fc[2].weight
    w3: (C, Cr)   -- fc[4].weight
    returns x * sigmoid(w3 @ relu(w2 @ relu(w1 @ avgpool(x))))
    """
    N, C, H, W = x.shape
    HW = H * W
    x2 = x.reshape(N, C, HW)

    # Weight layout prep hoisted out of the kernel; keep f32 (no bf16 round-trip).
    w1t = jnp.transpose(w1).astype(jnp.float32)   # (C,  Cr)
    w2t = jnp.transpose(w2).astype(jnp.float32)   # (Cr, Cr)
    w3t = jnp.transpose(w3).astype(jnp.float32)   # (Cr, C)

    # Generation-aware block budget / VMEM limit.
    vmem_cap = _vmem_capacity_bytes()
    budget = (block_budget_bytes if block_budget_bytes is not None
              else min(16 * 1024 * 1024, vmem_cap // 10))
    vmem_limit = min(vmem_cap // 2, 64 * 1024 * 1024)

    bytes_per_sample = C * HW * x.dtype.itemsize
    if bytes_per_sample <= budget:
        bn = _pick_bn(N, bytes_per_sample, budget)
        out = _se_fused(x2, w1t, w2t, w3t, bn=bn, vmem_limit=vmem_limit)
    else:
        out = _se_two_pass(x2, w1t, w2t, w3t, budget=budget,
                           vmem_limit=vmem_limit)
    return out.reshape(N, C, H, W)


def _reference(x, w1, w2, w3):
    # Pure-JAX mirror of the PyTorch SELayer forward.
    xf = x.astype(jnp.float32)
    y = xf.mean(axis=(2, 3))                                  # (N, C)
    y = jax.nn.relu(y @ w1.astype(jnp.float32).T)
    y = jax.nn.relu(y @ w2.astype(jnp.float32).T)
    y = jax.nn.sigmoid(y @ w3.astype(jnp.float32).T)
    return (xf * y[:, :, None, None]).astype(x.dtype)


if __name__ == "__main__":
    key = jax.random.PRNGKey(0)
    kx, k1, k2, k3, kx2 = jax.random.split(key, 5)

    N, C, H, W = 2, 64, 16, 16
    reduction = 16
    Cr = C // reduction  # 4

    x = jax.random.normal(kx, (N, C, H, W), dtype=jnp.float32)
    w1 = jax.random.normal(k1, (Cr, C), dtype=jnp.float32) * (1.0 / jnp.sqrt(C))
    w2 = jax.random.normal(k2, (Cr, Cr), dtype=jnp.float32) * (1.0 / jnp.sqrt(Cr))
    w3 = jax.random.normal(k3, (C, Cr), dtype=jnp.float32) * (1.0 / jnp.sqrt(Cr))

    # Compute references BEFORE the kernel calls (outputs may alias x's buffer).
    ref = _reference(x, w1, w2, w3)

    # Fast path: fused single-pass kernel.
    out = jax.block_until_ready(se_layer(x, w1, w2, w3))
    assert out.shape == (N, C, H, W)
    assert jnp.allclose(out, ref, atol=1e-5, rtol=1e-5), float(
        jnp.max(jnp.abs(out - ref)))

    # Fallback path: force the HW-tiled two-pass route (sample > block budget),
    # including a masked partial spatial tile (HW = 16*9 = 144, tile = 128).
    H2, W2 = 16, 9
    x_big = jax.random.normal(kx2, (N, C, H2, W2), dtype=jnp.float32)
    ref_big = _reference(x_big, w1, w2, w3)
    out_big = jax.block_until_ready(
        se_layer(x_big, w1, w2, w3, block_budget_bytes=C * 128 * 4))
    assert out_big.shape == (N, C, H2, W2)
    assert jnp.allclose(out_big, ref_big, atol=1e-5, rtol=1e-5), float(
        jnp.max(jnp.abs(out_big - ref_big)))

    print("KERNEL_OK")
</pallas_src>

<mosaic_0001>
module attributes {stable_mosaic.version = 11 : i64} {
  func.func @_se_fused_kernel(%arg0: i32, %arg1: memref<1x64x256xf32, #tpu.memory_space<vmem>>, %arg2: memref<64x4xf32, #tpu.memory_space<vmem>>, %arg3: memref<4x4xf32, #tpu.memory_space<vmem>>, %arg4: memref<4x64xf32, #tpu.memory_space<vmem>>, %arg5: memref<1x64x256xf32, #tpu.memory_space<vmem>>) attributes {dimension_semantics = [#tpu.dimension_semantics<parallel>], iteration_bounds = array<i64: 2>, scalar_prefetch = 0 : i64, scratch_operands = 0 : i64, tpu.core_type = #tpu.core_type<tc>, window_params = [{transform_indices = @transform_0, window_bounds = array<i64: 1, 64, 256>}, {pipeline_mode = #tpu.pipeline_mode<synchronous>, transform_indices = @transform_1, window_bounds = array<i64: 64, 4>}, {pipeline_mode = #tpu.pipeline_mode<synchronous>, transform_indices = @transform_2, window_bounds = array<i64: 4, 4>}, {pipeline_mode = #tpu.pipeline_mode<synchronous>, transform_indices = @transform_3, window_bounds = array<i64: 4, 64>}, {transform_indices = @transform_4, window_bounds = array<i64: 1, 64, 256>}]} {
    %c0 = arith.constant 0 : index
    %c0_0 = arith.constant 0 : index
    %c0_1 = arith.constant 0 : index
    %0 = vector.load %arg1[%c0, %c0_0, %c0_1] : memref<1x64x256xf32, #tpu.memory_space<vmem>>, vector<1x64x256xf32>
    %cst = arith.constant dense<0.000000e+00> : vector<1x64xf32>
    %1 = vector.multi_reduction <add>, %0, %cst [2] : vector<1x64x256xf32> to vector<1x64xf32>
    %cst_2 = arith.constant 3.906250e-03 : f32
    %2 = vector.broadcast %cst_2 : f32 to vector<1x64xf32>
    %3 = arith.mulf %1, %2 : vector<1x64xf32>
    %c0_3 = arith.constant 0 : index
    %c0_4 = arith.constant 0 : index
    %4 = vector.load %arg2[%c0_3, %c0_4] : memref<64x4xf32, #tpu.memory_space<vmem>>, vector<64x4xf32>
    %cst_5 = arith.constant dense<0.000000e+00> : vector<1x4xf32>
    %5 = tpu.matmul %3, %4, %cst_5 {dimension_numbers = #tpu.dot_dimension_numbers<[1], [0], [0], [1], [0, 0, 1, 1], [], []>} : vector<1x64xf32>, vector<64x4xf32>, vector<1x4xf32> -> vector<1x4xf32>
    %cst_6 = arith.constant 0.000000e+00 : f32
    %6 = vector.broadcast %cst_6 : f32 to vector<1x4xf32>
    %7 = arith.maximumf %5, %6 : vector<1x4xf32>
    %c0_7 = arith.constant 0 : index
    %c0_8 = arith.constant 0 : index
    %8 = vector.load %arg3[%c0_7, %c0_8] : memref<4x4xf32, #tpu.memory_space<vmem>>, vector<4x4xf32>
    %cst_9 = arith.constant dense<0.000000e+00> : vector<1x4xf32>
    %9 = tpu.matmul %7, %8, %cst_9 {dimension_numbers = #tpu.dot_dimension_numbers<[1], [0], [0], [1], [0, 0, 1, 1], [], []>} : vector<1x4xf32>, vector<4x4xf32>, vector<1x4xf32> -> vector<1x4xf32>
    %cst_10 = arith.constant 0.000000e+00 : f32
    %10 = vector.broadcast %cst_10 : f32 to vector<1x4xf32>
    %11 = arith.maximumf %9, %10 : vector<1x4xf32>
    %c0_11 = arith.constant 0 : index
    %c0_12 = arith.constant 0 : index
    %12 = vector.load %arg4[%c0_11, %c0_12] : memref<4x64xf32, #tpu.memory_space<vmem>>, vector<4x64xf32>
    %cst_13 = arith.constant dense<0.000000e+00> : vector<1x64xf32>
    %13 = tpu.matmul %11, %12, %cst_13 {dimension_numbers = #tpu.dot_dimension_numbers<[1], [0], [0], [1], [0, 0, 1, 1], [], []>} : vector<1x4xf32>, vector<4x64xf32>, vector<1x64xf32> -> vector<1x64xf32>
    %cst_14 = arith.constant 0.000000e+00 : f32
    %14 = vector.broadcast %cst_14 : f32 to vector<1x64xf32>
    %15 = arith.subf %14, %13 : vector<1x64xf32>
    %16 = math.exp %15 : vector<1x64xf32>
    %cst_15 = arith.constant 1.000000e+00 : f32
    %17 = vector.broadcast %cst_15 : f32 to vector<1x64xf32>
    %18 = arith.addf %17, %16 : vector<1x64xf32>
    %19 = tpu.reciprocal %18 : vector<1x64xf32> -> vector<1x64xf32>
    %c0_16 = arith.constant 0 : index
    %c0_17 = arith.constant 0 : index
    %c0_18 = arith.constant 0 : index
    %20 = vector.load %arg1[%c0_16, %c0_17, %c0_18] : memref<1x64x256xf32, #tpu.memory_space<vmem>>, vector<1x64x256xf32>
    %21 = vector.shape_cast %19 : vector<1x64xf32> to vector<1x64x1xf32>
    %22 = vector.broadcast %21 : vector<1x64x1xf32> to vector<1x64x256xf32>
    %23 = arith.mulf %20, %22 : vector<1x64x256xf32>
    %c0_19 = arith.constant 0 : index
    %c0_20 = arith.constant 0 : index
    %c0_21 = arith.constant 0 : index
    %24 = vector.load %arg5[%c0_19, %c0_20, %c0_21] : memref<1x64x256xf32, #tpu.memory_space<vmem>>, vector<1x64x256xf32>
    tpu.vector_store %arg5[%c0_19, %c0_20, %c0_21], %23 {strides = array<i32>} : memref<1x64x256xf32, #tpu.memory_space<vmem>>, vector<1x64x256xf32>,
    return
  }
  func.func @transform_0(%arg0: i32) -> (i32, i32, i32) {
    %c0_i32 = arith.constant 0 : i32
    %c0_i32_0 = arith.constant 0 : i32
    %c0_i32_1 = arith.constant 0 : i32
    return %arg0, %c0_i32, %c0_i32_0 : i32, i32, i32
  }
  func.func @transform_1(%arg0: i32) -> (i32, i32) {
    %c0_i32 = arith.constant 0 : i32
    %c0_i32_0 = arith.constant 0 : i32
    %c0_i32_1 = arith.constant 0 : i32
    return %c0_i32, %c0_i32_0 : i32, i32
  }
  func.func @transform_2(%arg0: i32) -> (i32, i32) {
    %c0_i32 = arith.constant 0 : i32
    %c0_i32_0 = arith.constant 0 : i32
    %c0_i32_1 = arith.constant 0 : i32
    return %c0_i32, %c0_i32_0 : i32, i32
  }
  func.func @transform_3(%arg0: i32) -> (i32, i32) {
    %c0_i32 = arith.constant 0 : i32
    %c0_i32_0 = arith.constant 0 : i32
    %c0_i32_1 = arith.constant 0 : i32
    return %c0_i32, %c0_i32_0 : i32, i32
  }
  func.func @transform_4(%arg0: i32) -> (i32, i32, i32) {
    %c0_i32 = arith.constant 0 : i32
    %c0_i32_0 = arith.constant 0 : i32
    %c0_i32_1 = arith.constant 0 : i32
    return %arg0, %c0_i32, %c0_i32_0 : i32, i32, i32
  }
}

</mosaic_0001>

<llo_original>
// kernel: tpu_custom_call.1
$region0: #{tpu_custom_call.1}
  #allocation0 [shape = 'u32[]', space=smem, size = 0x4, offset = 0x4, fixed_abs, tag = 'smem constant byte address 0x4 - core index']
  #allocation1 [shape = 'u32[144,128]{1,0:T(1,128)}', space=vmem, size = 0x12000, scoped, tag = 'internal scratch']
  %s0 = inlined_call_operand.hbm [shape: f32[2,64,256], index: 0, kind: input, shape index: {}, may-alias: {0,4}]
  %s1 = inlined_call_operand.vmem [shape: f32[64,4], index: 1, kind: input, shape index: {}]
  %s2 = inlined_call_operand.vmem [shape: f32[4,4], index: 2, kind: input, shape index: {}]
  %s3 = inlined_call_operand.vmem [shape: f32[4,64], index: 3, kind: input, shape index: {}]
  %s4 = inlined_call_operand.hbm [shape: f32[2,64,256], index: 4, kind: output, shape index: {}, may-alias: {0,4}]
  %s5 = sld [smem:[#allocation0]]
  $region53: #{tpu_custom_call.1} parent=0
    _
  %s7 = ssub.s32 1, %s5
  %s8 = scalar_select 0, %s7, %s5
  $region1: #{tpu_custom_call.1} parent=0
    #allocation2 [shape = 'u8[131072]{0}', space=vmem, size = 0x20000, scoped, tag = 'input window, operand 0']
    #allocation3 [shape = 's32[2]{0}', space=sflag, size = 0x8, scoped, tag = 'scoped memory for tpu_custom_call.1']
    #allocation4 [shape = 's32[2]{0}', space=sflag, size = 0x8, scoped, tag = 'scoped memory for tpu_custom_call.1']
    #allocation5 [shape = 'u8[131072]{0}', space=vmem, size = 0x20000, scoped, tag = 'output window, operand 0']
    %9 = vsyncpa [#allocation3], 0
    %s10 = scalar_lea.sflag [#allocation3], 1
    %11 = vsyncpa %s10, 0
    %12 = vsyncpa [#allocation4], 0
    %s13 = scalar_lea.sflag [#allocation4], 1
    %14 = vsyncpa %s13, 0
    loop: start=0, step=1, limit=4
    $region2: #{tpu_custom_call.1} parent=1 // loop_pre_header
      _
    $region3: #{tpu_custom_call.1} parent=1 // loop_header
      %s16 = sphi 0, %s20
      %p17 = scmp.ge.s32.totalorder %s16, 4
      %s26 = sphi 0, %s28
      %s29 = sphi 0, %s26
      %s30 = sphi 0, %s29
      %s46 = sphi 0, %s30
      %s50 = sphi 0, %s50
      %s52 = sphi 0, %s50
      %s53 = sphi 0, %s52
      %s67 = sphi 0, %s53
      %s71 = sphi 0, %s71
      %s73 = sphi 0, %s71
      %s74 = sphi 0, %s73
      %s88 = sphi 0, %s74
      %s92 = sphi 0, %s92
      %s94 = sphi 0, %s92
      %s95 = sphi 0, %s94
      %s109 = sphi 0, %s95
      %s115 = sphi 0, %s117
      %s118 = sphi 0, %s115
      %s119 = sphi 0, %s118
      %s135 = sphi 0, %s119
    $region4: #{tpu_custom_call.1} parent=1 // loop_header_branch
      %19 = sbr.rel (%p17) target = $region8
    $region5: #{tpu_custom_call.1} parent=1 // loop_body
      %s21 = ssub.s32 %s16, 1
      %s22 = ssub.s32 %s16, 2
      %s23 = sadd.s32 %s16, 1
      %s24 = ssub.s32 %s16, %s23
      %p25 = scmp.eq.s32.totalorder %s24, 0
      %s27 = sadd.s32 %s26, 1
      %s28 = scalar_select %p25, %s26, %s27
      %p31 = pneg %p25
      %p32 = scmp.eq.s32.totalorder %s16, 1
      %p33 = por %p31, %p32
      %p34 = scmp.ne.s32.totalorder %s26, %s29
      %p35 = scmp.eq.s32.totalorder %s16, 0
      %p36 = por %p34, %p35
      %p37 = scmp.ne.s32.totalorder %s26, %s29
      %p38 = scmp.eq.s32.totalorder %s21, 1
      %p39 = por %p37, %p38
      %p40 = scmp.ne.s32.totalorder %s29, %s30
      %p41 = scmp.eq.s32.totalorder %s21, 0
      %p42 = por %p40, %p41
      %p43 = scmp.ne.s32.totalorder %s29, %s30
      %p44 = scmp.eq.s32.totalorder %s22, 1
      %p45 = por %p43, %p44
      %p47 = scmp.ne.s32.totalorder %s30, %s46
      %p48 = scmp.eq.s32.totalorder %s22, 0
      %p49 = por %p47, %p48
      %s51 = sadd.s32 %s50, 1
      %p54 = scmp.eq.s32.totalorder %s16, 1
      %p55 = scmp.ne.s32.totalorder %s50, %s52
      %p56 = scmp.eq.s32.totalorder %s16, 0
      %p57 = por %p55, %p56
      %p58 = scmp.ne.s32.totalorder %s50, %s52
      %p59 = scmp.eq.s32.totalorder %s21, 1
      %p60 = por %p58, %p59
      %p61 = scmp.ne.s32.totalorder %s52, %s53
      %p62 = scmp.eq.s32.totalorder %s21, 0
      %p63 = por %p61, %p62
      %p64 = scmp.ne.s32.totalorder %s52, %s53
      %p65 = scmp.eq.s32.totalorder %s22, 1
      %p66 = por %p64, %p65
      %p68 = scmp.ne.s32.totalorder %s53, %s67
      %p69 = scmp.eq.s32.totalorder %s22, 0
      %p70 = por %p68, %p69
      %s72 = sadd.s32 %s71, 1
      %p75 = scmp.eq.s32.totalorder %s16, 1
      %p76 = scmp.ne.s32.totalorder %s71, %s73
      %p77 = scmp.eq.s32.totalorder %s16, 0
      %p78 = por %p76, %p77
      %p79 = scmp.ne.s32.totalorder %s71, %s73
      %p80 = scmp.eq.s32.totalorder %s21, 1
      %p81 = por %p79, %p80
      %p82 = scmp.ne.s32.totalorder %s73, %s74
      %p83 = scmp.eq.s32.totalorder %s21, 0
      %p84 = por %p82, %p83
      %p85 = scmp.ne.s32.totalorder %s73, %s74
      %p86 = scmp.eq.s32.totalorder %s22, 1
      %p87 = por %p85, %p86
      %p89 = scmp.ne.s32.totalorder %s74, %s88
      %p90 = scmp.eq.s32.totalorder %s22, 0
      %p91 = por %p89, %p90
      %s93 = sadd.s32 %s92, 1
      %p96 = scmp.eq.s32.totalorder %s16, 1
      %p97 = scmp.ne.s32.totalorder %s92, %s94
      %p98 = scmp.eq.s32.totalorder %s16, 0
      %p99 = por %p97, %p98
      %p100 = scmp.ne.s32.totalorder %s92, %s94
      %p101 = scmp.eq.s32.totalorder %s21, 1
      %p102 = por %p100, %p101
      %p103 = scmp.ne.s32.totalorder %s94, %s95
      %p104 = scmp.eq.s32.totalorder %s21, 0
      %p105 = por %p103, %p104
      %p106 = scmp.ne.s32.totalorder %s94, %s95
      %p107 = scmp.eq.s32.totalorder %s22, 1
      %p108 = por %p106, %p107
      %p110 = scmp.ne.s32.totalorder %s95, %s109
      %p111 = scmp.eq.s32.totalorder %s22, 0
      %p112 = por %p110, %p111
      %s113 = ssub.s32 %s16, %s23
      %p114 = scmp.eq.s32.totalorder %s113, 0
      %s116 = sadd.s32 %s115, 1
      %s117 = scalar_select %p114, %s115, %s116
      %p120 = pneg %p114
      %p121 = scmp.eq.s32.totalorder %s16, 1
      %p122 = por %p120, %p121
      %p123 = scmp.ne.s32.totalorder %s115, %s118
      %p124 = scmp.eq.s32.totalorder %s16, 0
      %p125 = por %p123, %p124
      %p126 = scmp.ne.s32.totalorder %s115, %s118
      %p127 = scmp.eq.s32.totalorder %s21, 1
      %p128 = por %p126, %p127
      %p129 = scmp.ne.s32.totalorder %s118, %s119
      %p130 = scmp.eq.s32.totalorder %s21, 0
      %p131 = por %p129, %p130
      %p132 = scmp.ne.s32.totalorder %s118, %s119
      %p133 = scmp.eq.s32.totalorder %s22, 1
      %p134 = por %p132, %p133
      %p136 = scmp.ne.s32.totalorder %s119, %s135
      %p137 = scmp.eq.s32.totalorder %s22, 0
      %p138 = por %p136, %p137
      %p139 = scmp.le.s32.totalorder 1, %s16
      %p140 = scmp.lt.s32.totalorder %s16, 3
      %p141 = pnand %p139, %p140
      %p142 = pneg %p141
      // Predicated region
      $region9: #{tpu_custom_call.1} parent=5 // pred_check
        _
      $region10: #{tpu_custom_call.1} parent=5 // pred_check_branch
        %144 = sbr.rel (%p141) target = $region12
      $region11: #{tpu_custom_call.1} parent=5 // pred_region
        %s145 = ssub.s32 %s16, 1
        // Predicated region
        $region13: #{tpu_custom_call.1} parent=11 // pred_check
          %p146 = pneg %p63
        $region14: #{tpu_custom_call.1} parent=11 // pred_check_branch
          %148 = sbr.rel (%p146) target = $region16
        $region15: #{tpu_custom_call.1} parent=11 // pred_region
          _
        $region16: #{tpu_custom_call.1} parent=11 // pred_fallthru
          _
        // Predicated region
        $region17: #{tpu_custom_call.1} parent=11 // pred_check
          %p149 = pneg %p84
        $region18: #{tpu_custom_call.1} parent=11 // pred_check_branch
          %151 = sbr.rel (%p149) target = $region20
        $region19: #{tpu_custom_call.1} parent=11 // pred_region
          _
        $region20: #{tpu_custom_call.1} parent=11 // pred_fallthru
          _
        // Predicated region
        $region21: #{tpu_custom_call.1} parent=11 // pred_check
          %p152 = pneg %p105
        $region22: #{tpu_custom_call.1} parent=11 // pred_check_branch
          %154 = sbr.rel (%p152) target = $region24
        $region23: #{tpu_custom_call.1} parent=11 // pred_region
          _
        $region24: #{tpu_custom_call.1} parent=11 // pred_fallthru
          _
      $region12: #{tpu_custom_call.1} parent=5 // pred_fallthru
        _
      %p155 = scmp.lt.s32.totalorder %s16, 2
      // Predicated region
      $region25: #{tpu_custom_call.1} parent=5 // pred_check
        %p156 = pneg %p155
      $region26: #{tpu_custom_call.1} parent=5 // pred_check_branch
        %158 = sbr.rel (%p156) target = $region28
      $region27: #{tpu_custom_call.1} parent=5 // pred_region
        // Predicated region
        $region29: #{tpu_custom_call.1} parent=27 // pred_check
          %p159 = pneg %p36
        $region30: #{tpu_custom_call.1} parent=27 // pred_check_branch
          %161 = sbr.rel (%p159) target = $region32
        $region31: #{tpu_custom_call.1} parent=27 // pred_region
          %s162 = sand.u32 %s26, 1
          %s163 = scalar_lea.sflag [#allocation3], %s162
          %s164 = sand.u32 %s26, 1
          %s165 = smul.addr %s164, 128
          %s166 = scalar_lea.vmem [#allocation2], %s165
          %s168 = ssub.s32 2048, 2048
          %169 = vsyncadd %s163, %s168
          %s170 = smul.addr %s16, 16
          %s171 = smul.addr %s170, 128
          %s172 = scalar_lea.hbm %s0, %s171
          %s173 = sshll.u32 %s166, 4
          %s174 = int_to_ptr.vmem [resolvable:$true] %s173
          %179 = dma.hbm_to_vmem [thread:$0]  %s172, 2048, %s174, %s163, 256, 256, 16
        $region32: #{tpu_custom_call.1} parent=27 // pred_fallthru
          _
      $region28: #{tpu_custom_call.1} parent=5 // pred_fallthru
        _
      %p180 = scmp.le.s32.totalorder 1, %s16
      %p181 = scmp.lt.s32.totalorder %s16, 3
      %p182 = pnand %p180, %p181
      %p183 = pneg %p182
      // Predicated region
      $region33: #{tpu_custom_call.1} parent=5 // pred_check
        _
      $region34: #{tpu_custom_call.1} parent=5 // pred_check_branch
        %185 = sbr.rel (%p182) target = $region36
      $region35: #{tpu_custom_call.1} parent=5 // pred_region
        %s186 = ssub.s32 %s16, 1
        %s187 = sand.u32 %s29, 1
        %s188 = scalar_lea.sflag [#allocation3], %s187
        %s189 = sand.u32 %s29, 1
        %s190 = smul.addr %s189, 128
        %s191 = scalar_lea.vmem [#allocation2], %s190
        // Predicated region
        $region37: #{tpu_custom_call.1} parent=35 // pred_check
          %p192 = pneg %p42
        $region38: #{tpu_custom_call.1} parent=35 // pred_check_branch
          %194 = sbr.rel (%p192) target = $region40
        $region39: #{tpu_custom_call.1} parent=35 // pred_region
          %195 = dma.done %s188, 2048
        $region40: #{tpu_custom_call.1} parent=35 // pred_fallthru
          _
        %s196 = sand.u32 %s29, 1
        %s197 = scalar_lea.sflag [#allocation3], %s196
        %s198 = sand.u32 %s29, 1
        %s199 = smul.addr %s198, 128
        %s200 = scalar_lea.vmem [#allocation2], %s199
        %p201 = pneg %p42
        %p202 = pneg %p39
        %p203 = pneg %p63
        %p204 = pneg %p60
        %p205 = pneg %p84
        %p206 = pneg %p81
        %p207 = pneg %p105
        %p208 = pneg %p102
        %p209 = pneg %p131
        %p210 = pneg %p128
        %s211 = sand.u32 %s118, 1
        %s212 = scalar_lea.sflag [#allocation4], %s211
        %s213 = sand.u32 %s118, 1
        %s214 = smul.addr %s213, 128
        %s215 = scalar_lea.vmem [#allocation5], %s214
        %v216 = vld [vmem:[%s191] sm:$0xff]
        %v217 = vld [vmem:[%s191 + $0x8] sm:$0xff]
        %v218 = vld [vmem:[%s191 + $0x10] sm:$0xff]
        %v219 = vld [vmem:[%s191 + $0x18] sm:$0xff]
        %v220 = vld [vmem:[%s191 + $0x20] sm:$0xff]
        %v221 = vld [vmem:[%s191 + $0x28] sm:$0xff]
        %v222 = vld [vmem:[%s191 + $0x30] sm:$0xff]
        %v223 = vld [vmem:[%s191 + $0x38] sm:$0xff]
        %v224 = vld [vmem:[%s191 + $0x40] sm:$0xff]
        %v225 = vld [vmem:[%s191 + $0x48] sm:$0xff]
        %v226 = vld [vmem:[%s191 + $0x50] sm:$0xff]
        %v227 = vld [vmem:[%s191 + $0x58] sm:$0xff]
        %v228 = vld [vmem:[%s191 + $0x60] sm:$0xff]
        %v229 = vld [vmem:[%s191 + $0x68] sm:$0xff]
        %v230 = vld [vmem:[%s191 + $0x70] sm:$0xff]
        %v231 = vld [vmem:[%s191 + $0x78] sm:$0xff]
        %v232 = vadd.f32 %v216, %v217
        %233 = vadd.xlane.f32.xlu0 %v232
        %v234 = vpop.xlane.xlu0 %233
        %v235 = vadd.f32 %v218, %v219
        %236 = vadd.xlane.f32.xlu0 %v235
        %v237 = vpop.xlane.xlu0 %236
        %v238 = vadd.f32 %v220, %v221
        %239 = vadd.xlane.f32.xlu0 %v238
        %v240 = vpop.xlane.xlu0 %239
        %v241 = vadd.f32 %v222, %v223
        %242 = vadd.xlane.f32.xlu0 %v241
        %v243 = vpop.xlane.xlu0 %242
        %v244 = vadd.f32 %v224, %v225
        %245 = vadd.xlane.f32.xlu0 %v244
        %v246 = vpop.xlane.xlu0 %245
        %v247 = vadd.f32 %v226, %v227
        %248 = vadd.xlane.f32.xlu0 %v247
        %v249 = vpop.xlane.xlu0 %248
        %v250 = vadd.f32 %v228, %v229
        %251 = vadd.xlane.f32.xlu0 %v250
        %v252 = vpop.xlane.xlu0 %251
        %v253 = vadd.f32 %v230, %v231
        %254 = vadd.xlane.f32.xlu0 %v253
        %v255 = vpop.xlane.xlu0 %254
        %v256 = vmul.f32 %v234, 0.00390625
        %v257 = vmul.f32 %v237, 0.00390625
        %v258 = vmul.f32 %v240, 0.00390625
        %v259 = vmul.f32 %v243, 0.00390625
        %v260 = vmul.f32 %v246, 0.00390625
        %v261 = vmul.f32 %v249, 0.00390625
        %v262 = vmul.f32 %v252, 0.00390625
        %v263 = vmul.f32 %v255, 0.00390625
        %v264 = vld [vmem:[%s1] sm:$0xff]
        %v265 = vld [vmem:[%s1 + $0x8] sm:$0xff]
        %v266 = vld [vmem:[%s1 + $0x10] sm:$0xff]
        %v267 = vld [vmem:[%s1 + $0x18] sm:$0xff]
        %v268 = vld [vmem:[%s1 + $0x20] sm:$0xff]
        %v269 = vld [vmem:[%s1 + $0x28] sm:$0xff]
        %v270 = vld [vmem:[%s1 + $0x30] sm:$0xff]
        %v271 = vld [vmem:[%s1 + $0x38] sm:$0xff]
        %v280 = vlaneseq
        %v281 = vand.u32 %v280, 127
        %v282 = vlaneseq
        %v283 = vshrl.u32 %v282, 7
        %v284 = vsub.s32 %v281, %v283
        %v285 = vrot.slane %v256, %v284
        %v286 = vadd.s32 %v281, 4294967288
        %v287 = vlaneseq
        %v288 = vshrl.u32 %v287, 7
        %v289 = vsub.s32 %v286, %v288
        %v290 = vrot.slane %v257, %v289
        %vm291 = vcmask 130112
        %v292 = vsel %vm291, %v290, %v285
        %v293 = vadd.s32 %v281, 4294967280
        %v294 = vlaneseq
        %v295 = vshrl.u32 %v294, 7
        %v296 = vsub.s32 %v293, %v295
        %v297 = vrot.slane %v258, %v296
        %vm298 = vcmask 195712
        %v299 = vsel %vm298, %v297, %v292
        %v300 = vadd.s32 %v281, 4294967272
        %v301 = vlaneseq
        %v302 = vshrl.u32 %v301, 7
        %v303 = vsub.s32 %v300, %v302
        %v304 = vrot.slane %v259, %v303
        %vm305 = vcmask 261312
        %v306 = vsel %vm305, %v304, %v299
        %v307 = vadd.s32 %v281, 4294967264
        %v308 = vlaneseq
        %v309 = vshrl.u32 %v308, 7
        %v310 = vsub.s32 %v307, %v309
        %v311 = vrot.slane %v260, %v310
        %vm312 = vcmask 326912
        %v313 = vsel %vm312, %v311, %v306
        %v314 = vadd.s32 %v281, 4294967256
        %v315 = vlaneseq
        %v316 = vshrl.u32 %v315, 7
        %v317 = vsub.s32 %v314, %v316
        %v318 = vrot.slane %v261, %v317
        %vm319 = vcmask 392512
        %v320 = vsel %vm319, %v318, %v313
        %v321 = vadd.s32 %v281, 4294967248
        %v322 = vlaneseq
        %v323 = vshrl.u32 %v322, 7
        %v324 = vsub.s32 %v321, %v323
        %v325 = vrot.slane %v262, %v324
        %vm326 = vcmask 458112
        %v327 = vsel %vm326, %v325, %v320
        %v328 = vadd.s32 %v281, 4294967240
        %v329 = vlaneseq
        %v330 = vshrl.u32 %v329, 7
        %v331 = vsub.s32 %v328, %v330
        %v332 = vrot.slane %v263, %v331
        %vm333 = vcmask 523712
        %v334 = vsel %vm333, %v332, %v327
        %vm335 = vcmask 523264
        %v336 = vsel %vm335, %v334, 0
        %338 = vmatprep.subr.mxu0 0.0
        %339 = vmatpush1.msra.mxu0 %v264
        %340 = vmatprep.subr.mxu0 0.0
        %341 = vmatpush1.msra.mxu0 %v265
        %342 = vmatprep.subr.mxu0 0.0
        %343 = vmatpush1.msra.mxu0 %v266
        %344 = vmatprep.subr.mxu0 0.0
        %345 = vmatpush1.msra.mxu0 %v267
        %346 = vmatprep.subr.mxu0 0.0
        %347 = vmatpush1.msra.mxu0 %v268
        %348 = vmatprep.subr.mxu0 0.0
        %349 = vmatpush1.msra.mxu0 %v269
        %350 = vmatprep.subr.mxu0 0.0
        %351 = vmatpush1.msra.mxu0 %v270
        %352 = vmatprep.subr.mxu0 0.0
        %353 = vmatpush1.msra.mxu0 %v271
        %354 = vmatprep.subr.mxu0 0.0
        %355 = vmatpush1.msra.mxu0 0.0
        %356 = vmatprep.subr.mxu0 0.0
        %357 = vmatpush1.msra.mxu0 0.0
        %358 = vmatprep.subr.mxu0 0.0
        %359 = vmatpush1.msra.mxu0 0.0
        %360 = vmatprep.subr.mxu0 0.0
        %361 = vmatpush1.msra.mxu0 0.0
        %362 = vmatprep.subr.mxu0 0.0
        %363 = vmatpush1.msra.mxu0 0.0
        %364 = vmatprep.subr.mxu0 0.0
        %365 = vmatpush1.msra.mxu0 0.0
        %366 = vmatprep.subr.mxu0 0.0
        %367 = vmatpush1.msra.mxu0 0.0
        %368 = vmatprep.subr.mxu0 0.0
        %369 = vmatpush1.msra.mxu0 0.0
        %370 = vmatprep.subr.mxu0 0.0
        %371 = vmatpush1.msra.mxu0 0.0
        %372 = vmatprep.subr.mxu0 0.0
        %373 = vmatpush1.msra.mxu0 0.0
        %374 = vmatprep.subr.mxu0 0.0
        %375 = vmatpush1.msra.mxu0 0.0
        %376 = vmatprep.subr.mxu0 0.0
        %377 = vmatpush1.msra.mxu0 0.0
        %378 = vmatprep.subr.mxu0 0.0
        %379 = vmatpush1.msra.mxu0 0.0
        %380 = vmatprep.subr.mxu0 0.0
        %381 = vmatpush1.msra.mxu0 0.0
        %382 = vmatprep.subr.mxu0 0.0
        %383 = vmatpush1.msra.mxu0 0.0
        %384 = vmatprep.subr.mxu0 0.0
        %385 = vmatpush1.msra.mxu0 0.0
        %386 = vmatprep.subr.mxu0 0.0
        %387 = vmatpush1.msra.mxu0 0.0
        %388 = vmatprep.subr.mxu0 0.0
        %389 = vmatpush1.msra.mxu0 0.0
        %390 = vmatprep.subr.mxu0 0.0
        %391 = vmatpush1.msra.mxu0 0.0
        %392 = vmatprep.subr.mxu0 0.0
        %393 = vmatpush1.msra.mxu0 0.0
        %394 = vmatprep.subr.mxu0 0.0
        %395 = vmatpush1.msra.mxu0 0.0
        %396 = vmatprep.subr.mxu0 0.0
        %397 = vmatpush1.msra.mxu0 0.0
        %398 = vmatprep.subr.mxu0 0.0
        %399 = vmatpush1.msra.mxu0 0.0
        %400 = vmatprep.subr.mxu0 0.0
        %401 = vmatpush1.msra.mxu0 0.0
        %402 = vmatprep.mubr.f32.mxu0 0.0
        %403 = vmatmul.mubr.f32.gmra.mrb[0].mxu0 %v336
        %v404 = vpop.f32.mrb[0].mxu0
        %v405 = vadd.f32 0.0, %v404
        %v406 = vpop.f32.mrb[0].mxu0
        %407 = vdwg.mxu0
        %v408 = vmax.f32 %v405, 0.0
        %v409 = vld [vmem:[%s2] sm:$0xf]
        %vm410 = vcmask 31744
        %v412 = vsel %vm410, %v408, 0
        %vm414 = vcmask 1043456
        %v416 = vsel %vm414, %v409, 0
        %418 = vmatprep.subr.mxu0 0.0
        %419 = vmatpush1.msra.mxu0 %v416
        %420 = vmatprep.subr.mxu0 0.0
        %421 = vmatpush1.msra.mxu0 0.0
        %422 = vmatprep.subr.mxu0 0.0
        %423 = vmatpush1.msra.mxu0 0.0
        %424 = vmatprep.subr.mxu0 0.0
        %425 = vmatpush1.msra.mxu0 0.0
        %426 = vmatprep.subr.mxu0 0.0
        %427 = vmatpush1.msra.mxu0 0.0
        %428 = vmatprep.subr.mxu0 0.0
        %429 = vmatpush1.msra.mxu0 0.0
        %430 = vmatprep.subr.mxu0 0.0
        %431 = vmatpush1.msra.mxu0 0.0
        %432 = vmatprep.subr.mxu0 0.0
        %433 = vmatpush1.msra.mxu0 0.0
        %434 = vmatprep.subr.mxu0 0.0
        %435 = vmatpush1.msra.mxu0 0.0
        %436 = vmatprep.subr.mxu0 0.0
        %437 = vmatpush1.msra.mxu0 0.0
        %438 = vmatprep.subr.mxu0 0.0
        %439 = vmatpush1.msra.mxu0 0.0
        %440 = vmatprep.subr.mxu0 0.0
        %441 = vmatpush1.msra.mxu0 0.0
        %442 = vmatprep.subr.mxu0 0.0
        %443 = vmatpush1.msra.mxu0 0.0
        %444 = vmatprep.subr.mxu0 0.0
        %445 = vmatpush1.msra.mxu0 0.0
        %446 = vmatprep.subr.mxu0 0.0
        %447 = vmatpush1.msra.mxu0 0.0
        %448 = vmatprep.subr.mxu0 0.0
        %449 = vmatpush1.msra.mxu0 0.0
        %450 = vmatprep.subr.mxu0 0.0
        %451 = vmatpush1.msra.mxu0 0.0
        %452 = vmatprep.subr.mxu0 0.0
        %453 = vmatpush1.msra.mxu0 0.0
        %454 = vmatprep.subr.mxu0 0.0
        %455 = vmatpush1.msra.mxu0 0.0
        %456 = vmatprep.subr.mxu0 0.0
        %457 = vmatpush1.msra.mxu0 0.0
        %458 = vmatprep.subr.mxu0 0.0
        %459 = vmatpush1.msra.mxu0 0.0
        %460 = vmatprep.subr.mxu0 0.0
        %461 = vmatpush1.msra.mxu0 0.0
        %462 = vmatprep.subr.mxu0 0.0
        %463 = vmatpush1.msra.mxu0 0.0
        %464 = vmatprep.subr.mxu0 0.0
        %465 = vmatpush1.msra.mxu0 0.0
        %466 = vmatprep.subr.mxu0 0.0
        %467 = vmatpush1.msra.mxu0 0.0
        %468 = vmatprep.subr.mxu0 0.0
        %469 = vmatpush1.msra.mxu0 0.0
        %470 = vmatprep.subr.mxu0 0.0
        %471 = vmatpush1.msra.mxu0 0.0
        %472 = vmatprep.subr.mxu0 0.0
        %473 = vmatpush1.msra.mxu0 0.0
        %474 = vmatprep.subr.mxu0 0.0
        %475 = vmatpush1.msra.mxu0 0.0
        %476 = vmatprep.subr.mxu0 0.0
        %477 = vmatpush1.msra.mxu0 0.0
        %478 = vmatprep.subr.mxu0 0.0
        %479 = vmatpush1.msra.mxu0 0.0
        %480 = vmatprep.subr.mxu0 0.0
        %481 = vmatpush1.msra.mxu0 0.0
        %482 = vmatprep.mubr.f32.mxu0 0.0
        %483 = vmatmul.mubr.f32.gmra.mrb[0].mxu0 %v412
        %v484 = vpop.f32.mrb[0].mxu0
        %v485 = vadd.f32 0.0, %v484
        %v486 = vpop.f32.mrb[0].mxu0
        %487 = vdwg.mxu0
        %v488 = vmax.f32 %v485, 0.0
        %v489 = vld [vmem:[%s3] sm:$0xf]
        %v491 = vsel %vm410, %v488, 0
        %v494 = vsel %vm414, %v489, 0
        %496 = vmatprep.subr.mxu0 0.0
        %497 = vmatpush1.msra.mxu0 %v494
        %498 = vmatprep.subr.mxu0 0.0
        %499 = vmatpush1.msra.mxu0 0.0
        %500 = vmatprep.subr.mxu0 0.0
        %501 = vmatpush1.msra.mxu0 0.0
        %502 = vmatprep.subr.mxu0 0.0
        %503 = vmatpush1.msra.mxu0 0.0
        %504 = vmatprep.subr.mxu0 0.0
        %505 = vmatpush1.msra.mxu0 0.0
        %506 = vmatprep.subr.mxu0 0.0
        %507 = vmatpush1.msra.mxu0 0.0
        %508 = vmatprep.subr.mxu0 0.0
        %509 = vmatpush1.msra.mxu0 0.0
        %510 = vmatprep.subr.mxu0 0.0
        %511 = vmatpush1.msra.mxu0 0.0
        %512 = vmatprep.subr.mxu0 0.0
        %513 = vmatpush1.msra.mxu0 0.0
        %514 = vmatprep.subr.mxu0 0.0
        %515 = vmatpush1.msra.mxu0 0.0
        %516 = vmatprep.subr.mxu0 0.0
        %517 = vmatpush1.msra.mxu0 0.0
        %518 = vmatprep.subr.mxu0 0.0
        %519 = vmatpush1.msra.mxu0 0.0
        %520 = vmatprep.subr.mxu0 0.0
        %521 = vmatpush1.msra.mxu0 0.0
        %522 = vmatprep.subr.mxu0 0.0
        %523 = vmatpush1.msra.mxu0 0.0
        %524 = vmatprep.subr.mxu0 0.0
        %525 = vmatpush1.msra.mxu0 0.0
        %526 = vmatprep.subr.mxu0 0.0
        %527 = vmatpush1.msra.mxu0 0.0
        %528 = vmatprep.subr.mxu0 0.0
        %529 = vmatpush1.msra.mxu0 0.0
        %530 = vmatprep.subr.mxu0 0.0
        %531 = vmatpush1.msra.mxu0 0.0
        %532 = vmatprep.subr.mxu0 0.0
        %533 = vmatpush1.msra.mxu0 0.0
        %534 = vmatprep.subr.mxu0 0.0
        %535 = vmatpush1.msra.mxu0 0.0
        %536 = vmatprep.subr.mxu0 0.0
        %537 = vmatpush1.msra.mxu0 0.0
        %538 = vmatprep.subr.mxu0 0.0
        %539 = vmatpush1.msra.mxu0 0.0
        %540 = vmatprep.subr.mxu0 0.0
        %541 = vmatpush1.msra.mxu0 0.0
        %542 = vmatprep.subr.mxu0 0.0
        %543 = vmatpush1.msra.mxu0 0.0
        %544 = vmatprep.subr.mxu0 0.0
        %545 = vmatpush1.msra.mxu0 0.0
        %546 = vmatprep.subr.mxu0 0.0
        %547 = vmatpush1.msra.mxu0 0.0
        %548 = vmatprep.subr.mxu0 0.0
        %549 = vmatpush1.msra.mxu0 0.0
        %550 = vmatprep.subr.mxu0 0.0
        %551 = vmatpush1.msra.mxu0 0.0
        %552 = vmatprep.subr.mxu0 0.0
        %553 = vmatpush1.msra.mxu0 0.0
        %554 = vmatprep.subr.mxu0 0.0
        %555 = vmatpush1.msra.mxu0 0.0
        %556 = vmatprep.subr.mxu0 0.0
        %557 = vmatpush1.msra.mxu0 0.0
        %558 = vmatprep.subr.mxu0 0.0
        %559 = vmatpush1.msra.mxu0 0.0
        %560 = vmatprep.mubr.f32.mxu0 0.0
        %561 = vmatmul.mubr.f32.gmra.mrb[0].mxu0 %v491
        %v562 = vpop.f32.mrb[0].mxu0
        %v563 = vadd.f32 0.0, %v562
        %v564 = vpop.f32.mrb[0].mxu0
        %565 = vdwg.mxu0
        %v566 = vsub.f32 0.0, %v563
        %v567 = vmul.f32 %v566, 1.442695
        %v568 = vpow.pop %v567
        %v569 = vadd.f32 %v568, 1.0
        %v570 = vrcp.pop %v569
        %v571 = vlaneseq
        %v572 = vshrl.u32 %v571, 7
        %v573 = vsub.s32 0, %v572
        %v574 = vrot.slane %v570, %v573
        %576 = vbcast.lane.b32.xlu0 %v574, 256
        %v577 = vpop.permute.xlu0 %576
        %s579 = sor.u32 256, 8
        %580 = vbcast.lane.b32.xlu0 %v574, %s579
        %v581 = vpop.permute.xlu0 %580
        %s583 = sor.u32 256, 16
        %584 = vbcast.lane.b32.xlu0 %v574, %s583
        %v585 = vpop.permute.xlu0 %584
        %s587 = sor.u32 256, 24
        %588 = vbcast.lane.b32.xlu0 %v574, %s587
        %v589 = vpop.permute.xlu0 %588
        %s591 = sor.u32 256, 32
        %592 = vbcast.lane.b32.xlu0 %v574, %s591
        %v593 = vpop.permute.xlu0 %592
        %s595 = sor.u32 256, 40
        %596 = vbcast.lane.b32.xlu0 %v574, %s595
        %v597 = vpop.permute.xlu0 %596
        %s599 = sor.u32 256, 48
        %600 = vbcast.lane.b32.xlu0 %v574, %s599
        %v601 = vpop.permute.xlu0 %600
        %s603 = sor.u32 256, 56
        %604 = vbcast.lane.b32.xlu0 %v574, %s603
        %v605 = vpop.permute.xlu0 %604
        %v606 = vmul.f32 %v216, %v577
        %v607 = vmul.f32 %v217, %v577
        %v608 = vmul.f32 %v218, %v581
        %v609 = vmul.f32 %v219, %v581
        %v610 = vmul.f32 %v220, %v585
        %v611 = vmul.f32 %v221, %v585
        %v612 = vmul.f32 %v222, %v589
        %v613 = vmul.f32 %v223, %v589
        %v614 = vmul.f32 %v224, %v593
        %v615 = vmul.f32 %v225, %v593
        %v616 = vmul.f32 %v226, %v597
        %v617 = vmul.f32 %v227, %v597
        %v618 = vmul.f32 %v228, %v601
        %v619 = vmul.f32 %v229, %v601
        %v620 = vmul.f32 %v230, %v605
        %v621 = vmul.f32 %v231, %v605
        %622 = vst [vmem:[%s215] sm:$0xff] %v606
        %623 = vst [vmem:[%s215 + $0x8] sm:$0xff] %v607
        %624 = vst [vmem:[%s215 + $0x10] sm:$0xff] %v608
        %625 = vst [vmem:[%s215 + $0x18] sm:$0xff] %v609
        %626 = vst [vmem:[%s215 + $0x20] sm:$0xff] %v610
        %627 = vst [vmem:[%s215 + $0x28] sm:$0xff] %v611
        %628 = vst [vmem:[%s215 + $0x30] sm:$0xff] %v612
        %629 = vst [vmem:[%s215 + $0x38] sm:$0xff] %v613
        %630 = vst [vmem:[%s215 + $0x40] sm:$0xff] %v614
        %631 = vst [vmem:[%s215 + $0x48] sm:$0xff] %v615
        %632 = vst [vmem:[%s215 + $0x50] sm:$0xff] %v616
        %633 = vst [vmem:[%s215 + $0x58] sm:$0xff] %v617
        %634 = vst [vmem:[%s215 + $0x60] sm:$0xff] %v618
        %635 = vst [vmem:[%s215 + $0x68] sm:$0xff] %v619
        %636 = vst [vmem:[%s215 + $0x70] sm:$0xff] %v620
        %637 = vst [vmem:[%s215 + $0x78] sm:$0xff] %v621
        %s638 = sand.u32 %s118, 1
        %s639 = scalar_lea.sflag [#allocation4], %s638
        %s640 = sand.u32 %s118, 1
        %s641 = smul.addr %s640, 128
        %s642 = scalar_lea.vmem [#allocation5], %s641
        // Predicated region
        $region41: #{tpu_custom_call.1} parent=35 // pred_check
          %p643 = pneg %p128
        $region42: #{tpu_custom_call.1} parent=35 // pred_check_branch
          %645 = sbr.rel (%p643) target = $region44
        $region43: #{tpu_custom_call.1} parent=35 // pred_region
          %s647 = ssub.s32 2048, 2048
          %648 = vsyncadd %s639, %s647
          %s649 = smul.addr %s21, 16
          %s650 = smul.addr %s649, 128
          %s651 = scalar_lea.hbm %s4, %s650
          %s652 = sshll.u32 %s642, 4
          %s653 = int_to_ptr.vmem [resolvable:$true] %s652
          %658 = dma.vmem_to_hbm [thread:$0]  %s653, 2048, %s651, %s639, 256, 256, 16
        $region44: #{tpu_custom_call.1} parent=35 // pred_fallthru
          _
      $region36: #{tpu_custom_call.1} parent=5 // pred_fallthru
        _
      %p659 = scmp.le.s32.totalorder 2, %s16
      // Predicated region
      $region45: #{tpu_custom_call.1} parent=5 // pred_check
        %p660 = pneg %p659
      $region46: #{tpu_custom_call.1} parent=5 // pred_check_branch
        %662 = sbr.rel (%p660) target = $region48
      $region47: #{tpu_custom_call.1} parent=5 // pred_region
        %s663 = ssub.s32 %s16, 2
        // Predicated region
        $region49: #{tpu_custom_call.1} parent=47 // pred_check
          %p664 = pneg %p134
        $region50: #{tpu_custom_call.1} parent=47 // pred_check_branch
          %666 = sbr.rel (%p664) target = $region52
        $region51: #{tpu_custom_call.1} parent=47 // pred_region
          %s667 = sand.u32 %s119, 1
          %s668 = scalar_lea.sflag [#allocation4], %s667
          %s669 = sand.u32 %s119, 1
          %s670 = smul.addr %s669, 128
          %s671 = scalar_lea.vmem [#allocation5], %s670
          %672 = dma.done %s668, 2048
        $region52: #{tpu_custom_call.1} parent=47 // pred_fallthru
          _
      $region48: #{tpu_custom_call.1} parent=5 // pred_fallthru
        _
    $region6: #{tpu_custom_call.1} parent=1 // loop_footer
      %s20 = sadd.s32 1, %s16
    $region7: #{tpu_custom_call.1} parent=1 // loop_footer_branch
      %15 = sbr.rel target = $region3
    $region8: #{tpu_custom_call.1} parent=1 // loop_exit
      _
    %673 = vsyncpa [#allocation3], 1
    %s674 = scalar_lea.sflag [#allocation3], 1
    %675 = vsyncpa %s674, 1
    %676 = vsyncpa [#allocation4], 1
    %s677 = scalar_lea.sflag [#allocation4], 1
    %678 = vsyncpa %s677, 1

</llo_original>
